<compile_context>
chip_gen: v6e
topology: v6e:2x2x1
jax: 0.10.0
libtpu: 0.0.40
codegen_flags: <defaults>
</compile_context>

<pallas_src>
import functools
import math

import jax
import jax.numpy as jnp
from jax.experimental import pallas as pl
from jax.experimental.pallas import tpu as pltpu

ALPHA = 1e-5
QUANTS = 256


def _round_up(x, m):
    return (x + m - 1) // m * m


def _dequant_logit_kernel(packed_ref, ldj_ref, z_out_ref, ldj_out_ref, *, n_valid):
    # packed_ref:  (TB, N_pad) uint32   bits[7:0]  = discrete value 0..255
    #                                   bits[31:8] = random bits for U[0,1)
    # ldj_ref:     (TB, 1) float32      incoming log-det-jacobian
    # z_out_ref:   (TB, N_pad) float32
    # ldj_out_ref: (TB, 1) float32
    tb, n_pad = z_out_ref.shape

    bits = packed_ref[...]

    # ---- unpack the 8-bit discrete value ----
    z_f = (bits & jnp.uint32(0xFF)).astype(jnp.int32).astype(jnp.float32)

    # ---- unpack U[0,1) noise: top 23 random bits -> mantissa of [1,2) ----
    mant = (bits >> jnp.uint32(9)) | jnp.uint32(0x3F800000)
    noise = jax.lax.bitcast_convert_type(mant, jnp.float32) - 1.0

    # ---- fused dequant + alpha affine: z = (z_int + u) * (1-a)/Q + a/2 ----
    scale = (1.0 - ALPHA) / float(QUANTS)
    z = (z_f + noise) * scale + (0.5 * ALPHA)

    log_z = jnp.log(z)
    log_1mz = jnp.log(1.0 - z)

    term = -log_z - log_1mz
    if n_valid != n_pad:  # static branch: only emitted if the feature dim was padded
        col = jax.lax.broadcasted_iota(jnp.int32, (tb, n_pad), 1)
        term = jnp.where(col < n_valid, term, 0.0)

    # Per-sample constant uses the *valid* feature count (not the padded one).
    const = (-math.log(QUANTS) + math.log(1.0 - ALPHA)) * float(n_valid)
    ldj_out_ref[...] = ldj_ref[...] + const + jnp.sum(term, axis=1, keepdims=True)
    z_out_ref[...] = log_z - log_1mz


def dequantization_forward(z_nchw, ldj, rng_key):
    """Forward pass of Dequantization (reverse=False).

    z_nchw:  integer-valued (B, C, H, W) with entries in [0, QUANTS)
    ldj:     float32 (B,)
    rng_key: jax PRNG key for the dequantization noise
    Returns (z, ldj): z float32 (B, C, H, W), ldj float32 (B,).
    """
    B, C, H, W = z_nchw.shape
    N = C * H * W

    # Pack the 8-bit value and 24 noise bits into a single uint32 per element
    # (4 B/elem HBM read instead of 1 B value + 4 B f32 noise).
    z_u32 = z_nchw.reshape(B, N).astype(jnp.uint32) & jnp.uint32(0xFF)
    rbits = jax.random.bits(rng_key, (B, N), dtype=jnp.uint32)
    packed = (rbits & jnp.uint32(0xFFFFFF00)) | z_u32
    ldj_in = ldj.reshape(B, 1).astype(jnp.float32)

    # TPU-friendly padding / batch tiling.
    N_pad = _round_up(N, 128)
    # ~4 MiB of (in + out) f32 per block (double-buffered ~8 MiB), capped at
    # 256 rows; multiple of 8 so blocks align with the (8, 128) f32 tile.
    TB = min(256, max(8, (4 * 1024 * 1024) // (8 * N_pad) // 8 * 8))
    TB = min(TB, _round_up(B, 8))
    B_pad = _round_up(B, TB)

    pad_b, pad_n = B_pad - B, N_pad - N
    if pad_b or pad_n:
        packed = jnp.pad(packed, ((0, pad_b), (0, pad_n)))
    if pad_b:
        ldj_in = jnp.pad(ldj_in, ((0, pad_b), (0, 0)))

    grid = (B_pad // TB,)
    kernel = functools.partial(_dequant_logit_kernel, n_valid=N)

    cost = pl.CostEstimate(
        flops=10 * B_pad * N_pad,
        transcendentals=2 * B_pad * N_pad,
        bytes_accessed=B_pad * N_pad * (4 + 4) + B_pad * 16,
    )

    z_out, ldj_out = pl.pallas_call(
        kernel,
        out_shape=(
            jax.ShapeDtypeStruct((B_pad, N_pad), jnp.float32),
            jax.ShapeDtypeStruct((B_pad, 1), jnp.float32),
        ),
        grid_spec=pltpu.PrefetchScalarGridSpec(
            num_scalar_prefetch=0,
            grid=grid,
            in_specs=[
                pl.BlockSpec((TB, N_pad), lambda i: (i, 0)),
                pl.BlockSpec((TB, 1), lambda i: (i, 0)),
            ],
            out_specs=[
                pl.BlockSpec((TB, N_pad), lambda i: (i, 0)),
                pl.BlockSpec((TB, 1), lambda i: (i, 0)),
            ],
        ),
        compiler_params=pltpu.CompilerParams(
            dimension_semantics=("parallel",),
        ),
        cost_estimate=cost,
    )(packed, ldj_in)

    z_out = z_out[:B, :N].reshape(B, C, H, W)
    ldj_out = ldj_out[:B, 0]
    return z_out, ldj_out


if __name__ == "__main__":
    key = jax.random.PRNGKey(0)
    k_data, k_noise = jax.random.split(key)

    B, C, H, W = 2, 4, 16, 16
    N = C * H * W
    # Discrete 8-bit "image" input, as expected by Dequantization.
    z_in = jax.random.randint(k_data, (B, C, H, W), 0, QUANTS, dtype=jnp.int32)
    ldj_in = jnp.zeros((B,), dtype=jnp.float32)

    z_out, ldj_out = dequantization_forward(z_in, ldj_in, k_noise)
    jax.block_until_ready((z_out, ldj_out))

    # ---- validation against a pure-JAX reference (same noise bits) ----
    rbits = jax.random.bits(k_noise, (B, N), dtype=jnp.uint32)
    # >> 9 discards bits [8:0], so packing the pixel into [7:0] does not change it.
    mant = (rbits >> jnp.uint32(9)) | jnp.uint32(0x3F800000)
    noise = (jax.lax.bitcast_convert_type(mant, jnp.float32) - 1.0).reshape(B, C, H, W)
    scale = (1.0 - ALPHA) / float(QUANTS)
    zr = (z_in.astype(jnp.float32) + noise) * scale + 0.5 * ALPHA
    z_ref = jnp.log(zr) - jnp.log(1.0 - zr)
    const = (-math.log(QUANTS) + math.log(1.0 - ALPHA)) * N
    ldj_ref = ldj_in + const + jnp.sum(-jnp.log(zr) - jnp.log(1.0 - zr), axis=(1, 2, 3))

    assert bool(jnp.all(jnp.isfinite(z_out)))
    assert bool(jnp.all((noise >= 0.0) & (noise < 1.0)))
    assert jnp.allclose(z_out, z_ref, atol=1e-4, rtol=1e-5), float(
        jnp.max(jnp.abs(z_out - z_ref))
    )
    assert jnp.allclose(ldj_out, ldj_ref, atol=5e-2, rtol=1e-5), (ldj_out, ldj_ref)

    # TODO(synk): reverse=True branch (sigmoid forward + floor/clamp quantize)
    # of Dequantization.forward is not implemented as a kernel.
    print("KERNEL_OK")
</pallas_src>

<mosaic_0001>
module attributes {stable_mosaic.version = 11 : i64} {
  func.func @_dequant_logit_kernel(%arg0: i32, %arg1: memref<8x1024xi32, #tpu.memory_space<vmem>>, %arg2: memref<8x1xf32, #tpu.memory_space<vmem>>, %arg3: memref<8x1024xf32, #tpu.memory_space<vmem>>, %arg4: memref<8x1xf32, #tpu.memory_space<vmem>>) attributes {dimension_semantics = [#tpu.dimension_semantics<parallel>], iteration_bounds = array<i64: 1>, scalar_prefetch = 0 : i64, scratch_operands = 0 : i64, tpu.core_type = #tpu.core_type<tc>, window_params = [{transform_indices = @transform_0, window_bounds = array<i64: 8, 1024>}, {transform_indices = @transform_1, window_bounds = array<i64: 8, 1>}, {transform_indices = @transform_2, window_bounds = array<i64: 8, 1024>}, {transform_indices = @transform_3, window_bounds = array<i64: 8, 1>}]} {
    %c0 = arith.constant 0 : index
    %c0_0 = arith.constant 0 : index
    %0 = vector.load %arg1[%c0, %c0_0] : memref<8x1024xi32, #tpu.memory_space<vmem>>, vector<8x1024xi32>
    %c255_i32 = arith.constant 255 : i32
    %1 = vector.broadcast %c255_i32 : i32 to vector<8x1024xi32>
    %2 = arith.andi %0, %1 : vector<8x1024xi32>
    %3 = arith.sitofp %2 : vector<8x1024xi32> to vector<8x1024xf32>
    %c9_i32 = arith.constant 9 : i32
    %4 = vector.broadcast %c9_i32 : i32 to vector<8x1024xi32>
    %5 = arith.shrui %0, %4 : vector<8x1024xi32>
    %c1065353216_i32 = arith.constant 1065353216 : i32
    %6 = vector.broadcast %c1065353216_i32 : i32 to vector<8x1024xi32>
    %7 = arith.ori %5, %6 : vector<8x1024xi32>
    %8 = tpu.bitcast %7 : vector<8x1024xi32> -> vector<8x1024xf32>
    %cst = arith.constant 1.000000e+00 : f32
    %9 = vector.broadcast %cst : f32 to vector<8x1024xf32>
    %10 = arith.subf %8, %9 : vector<8x1024xf32>
    %11 = arith.addf %3, %10 : vector<8x1024xf32>
    %cst_1 = arith.constant 0.00390621088 : f32
    %12 = vector.broadcast %cst_1 : f32 to vector<8x1024xf32>
    %13 = arith.mulf %11, %12 : vector<8x1024xf32>
    %cst_2 = arith.constant 5.000000e-06 : f32
    %14 = vector.broadcast %cst_2 : f32 to vector<8x1024xf32>
    %15 = arith.addf %13, %14 : vector<8x1024xf32>
    %16 = math.log %15 : vector<8x1024xf32>
    %cst_3 = arith.constant 1.000000e+00 : f32
    %17 = vector.broadcast %cst_3 : f32 to vector<8x1024xf32>
    %18 = arith.subf %17, %15 : vector<8x1024xf32>
    %19 = math.log %18 : vector<8x1024xf32>
    %cst_4 = arith.constant 0.000000e+00 : f32
    %20 = vector.broadcast %cst_4 : f32 to vector<8x1024xf32>
    %21 = arith.subf %20, %16 : vector<8x1024xf32>
    %22 = arith.subf %21, %19 : vector<8x1024xf32>
    %c0_5 = arith.constant 0 : index
    %c0_6 = arith.constant 0 : index
    %23 = vector.load %arg2[%c0_5, %c0_6] : memref<8x1xf32, #tpu.memory_space<vmem>>, vector<8x1xf32>
    %cst_7 = arith.constant -5678.27197 : f32
    %24 = vector.broadcast %cst_7 : f32 to vector<8x1xf32>
    %25 = arith.addf %23, %24 : vector<8x1xf32>
    %cst_8 = arith.constant dense<0.000000e+00> : vector<8xf32>
    %26 = vector.multi_reduction <add>, %22, %cst_8 [1] : vector<8x1024xf32> to vector<8xf32>
    %27 = vector.shape_cast %26 : vector<8xf32> to vector<8x1xf32>
    %28 = arith.addf %25, %27 : vector<8x1xf32>
    %c0_9 = arith.constant 0 : index
    %c0_10 = arith.constant 0 : index
    %29 = vector.load %arg4[%c0_9, %c0_10] : memref<8x1xf32, #tpu.memory_space<vmem>>, vector<8x1xf32>
    tpu.vector_store %arg4[%c0_9, %c0_10], %28 {strides = array<i32>} : memref<8x1xf32, #tpu.memory_space<vmem>>, vector<8x1xf32>,
    %30 = arith.subf %16, %19 : vector<8x1024xf32>
    %c0_11 = arith.constant 0 : index
    %c0_12 = arith.constant 0 : index
    %31 = vector.load %arg3[%c0_11, %c0_12] : memref<8x1024xf32, #tpu.memory_space<vmem>>, vector<8x1024xf32>
    tpu.vector_store %arg3[%c0_11, %c0_12], %30 {strides = array<i32>} : memref<8x1024xf32, #tpu.memory_space<vmem>>, vector<8x1024xf32>,
    return
  }
  func.func @transform_0(%arg0: i32) -> (i32, i32) {
    %c0_i32 = arith.constant 0 : i32
    %c0_i32_0 = arith.constant 0 : i32
    return %arg0, %c0_i32 : i32, i32
  }
  func.func @transform_1(%arg0: i32) -> (i32, i32) {
    %c0_i32 = arith.constant 0 : i32
    %c0_i32_0 = arith.constant 0 : i32
    return %arg0, %c0_i32 : i32, i32
  }
  func.func @transform_2(%arg0: i32) -> (i32, i32) {
    %c0_i32 = arith.constant 0 : i32
    %c0_i32_0 = arith.constant 0 : i32
    return %arg0, %c0_i32 : i32, i32
  }
  func.func @transform_3(%arg0: i32) -> (i32, i32) {
    %c0_i32 = arith.constant 0 : i32
    %c0_i32_0 = arith.constant 0 : i32
    return %arg0, %c0_i32 : i32, i32
  }
}

</mosaic_0001>

<llo_original>
// kernel: tpu_custom_call.1
$region0: #{tpu_custom_call.1}
  #allocation0 [shape = 'u32[]', space=smem, size = 0x4, offset = 0x4, fixed_abs, tag = 'smem constant byte address 0x4 - core index']
  #allocation1 [shape = 'u32[144,128]{1,0:T(1,128)}', space=vmem, size = 0x12000, scoped, tag = 'internal scratch']
  %s0 = inlined_call_operand.hbm [shape: u32[8,1024], index: 0, kind: input, shape index: {}]
  %s1 = inlined_call_operand.vmem [shape: f32[8,1], index: 1, kind: input, shape index: {}]
  %s2 = inlined_call_operand.hbm [shape: f32[8,1024], index: 2, kind: output, shape index: {0}]
  %s3 = inlined_call_operand.vmem [shape: f32[8,1], index: 3, kind: output, shape index: {1}]
  %4 = xla_tuple %s2, %s3
  %s5 = sld [smem:[#allocation0]]
  $region30: #{tpu_custom_call.1} parent=0
    _
  %s7 = ssub.s32 1, %s5
  %s8 = scalar_select 0, %s7, %s5
  $region1: #{tpu_custom_call.1} parent=0
    #allocation2 [shape = 'u8[32768]{0}', space=vmem, size = 0x8000, scoped, tag = 'input window, operand 0, single buffered']
    #allocation3 [shape = 's32[1]{0}', space=sflag, size = 0x4, scoped, tag = 'scoped memory for tpu_custom_call.1']
    #allocation4 [shape = 's32[1]{0}', space=sflag, size = 0x4, scoped, tag = 'scoped memory for tpu_custom_call.1']
    #allocation5 [shape = 'u8[32768]{0}', space=vmem, size = 0x8000, scoped, tag = 'output window, operand 0, single buffered']
    %9 = vsyncpa [#allocation3], 0
    %10 = vsyncpa [#allocation4], 0
    // Predicated region
    $region2: #{tpu_custom_call.1} parent=1 // pred_check
      _
    $region3: #{tpu_custom_call.1} parent=1 // pred_check_branch
      %12 = sbr.rel (0) target = $region5
    $region4: #{tpu_custom_call.1} parent=1 // pred_region
      %s14 = ssub.s32 1024, 1024
      %15 = vsyncadd [#allocation3], %s14
      %s17 = sshll.u32 [#allocation2], 4
      %s18 = int_to_ptr.vmem [resolvable:$true] %s17
      %20 = dma.hbm_to_vmem [thread:$0]  %s0, 1024, %s18, [#allocation3]
    $region5: #{tpu_custom_call.1} parent=1 // pred_fallthru
      _
    // Predicated region
    $region6: #{tpu_custom_call.1} parent=1 // pred_check
      _
    $region7: #{tpu_custom_call.1} parent=1 // pred_check_branch
      %22 = sbr.rel (0) target = $region9
    $region8: #{tpu_custom_call.1} parent=1 // pred_region
      _
    $region9: #{tpu_custom_call.1} parent=1 // pred_fallthru
      _
    // Predicated region
    $region10: #{tpu_custom_call.1} parent=1 // pred_check
      _
    $region11: #{tpu_custom_call.1} parent=1 // pred_check_branch
      %24 = sbr.rel (0) target = $region13
    $region12: #{tpu_custom_call.1} parent=1 // pred_region
      %25 = dma.done [#allocation3], 1024
    $region13: #{tpu_custom_call.1} parent=1 // pred_fallthru
      _
    %v26 = vld [vmem:[#allocation2] sm:$0xff]
    %v27 = vld [vmem:[#allocation2 + $0x8] sm:$0xff]
    %v28 = vld [vmem:[#allocation2 + $0x10] sm:$0xff]
    %v29 = vld [vmem:[#allocation2 + $0x18] sm:$0xff]
    %v30 = vld [vmem:[#allocation2 + $0x20] sm:$0xff]
    %v31 = vld [vmem:[#allocation2 + $0x28] sm:$0xff]
    %v32 = vld [vmem:[#allocation2 + $0x30] sm:$0xff]
    %v33 = vld [vmem:[#allocation2 + $0x38] sm:$0xff]
    %v34 = vand.u32 %v26, 255
    %v35 = vand.u32 %v27, 255
    %v36 = vand.u32 %v28, 255
    %v37 = vand.u32 %v29, 255
    %v38 = vand.u32 %v30, 255
    %v39 = vand.u32 %v31, 255
    %v40 = vand.u32 %v32, 255
    %v41 = vand.u32 %v33, 255
    %v42 = vcvt.s32.f32 %v34
    %v43 = vcvt.s32.f32 %v35
    %v44 = vcvt.s32.f32 %v36
    %v45 = vcvt.s32.f32 %v37
    %v46 = vcvt.s32.f32 %v38
    %v47 = vcvt.s32.f32 %v39
    %v48 = vcvt.s32.f32 %v40
    %v49 = vcvt.s32.f32 %v41
    %v50 = vshrl.u32 %v26, 9
    %v51 = vshrl.u32 %v27, 9
    %v52 = vshrl.u32 %v28, 9
    %v53 = vshrl.u32 %v29, 9
    %v54 = vshrl.u32 %v30, 9
    %v55 = vshrl.u32 %v31, 9
    %v56 = vshrl.u32 %v32, 9
    %v57 = vshrl.u32 %v33, 9
    %v58 = vor.u32 %v50, 1065353216
    %v59 = vor.u32 %v51, 1065353216
    %v60 = vor.u32 %v52, 1065353216
    %v61 = vor.u32 %v53, 1065353216
    %v62 = vor.u32 %v54, 1065353216
    %v63 = vor.u32 %v55, 1065353216
    %v64 = vor.u32 %v56, 1065353216
    %v65 = vor.u32 %v57, 1065353216
    %v74 = vsub.f32 %v58, 1.0
    %v75 = vsub.f32 %v59, 1.0
    %v76 = vsub.f32 %v60, 1.0
    %v77 = vsub.f32 %v61, 1.0
    %v78 = vsub.f32 %v62, 1.0
    %v79 = vsub.f32 %v63, 1.0
    %v80 = vsub.f32 %v64, 1.0
    %v81 = vsub.f32 %v65, 1.0
    %v82 = vadd.f32 %v42, %v74
    %v83 = vadd.f32 %v43, %v75
    %v84 = vadd.f32 %v44, %v76
    %v85 = vadd.f32 %v45, %v77
    %v86 = vadd.f32 %v46, %v78
    %v87 = vadd.f32 %v47, %v79
    %v88 = vadd.f32 %v48, %v80
    %v89 = vadd.f32 %v49, %v81
    %v90 = vmul.f32 %v82, 0.003906211
    %v91 = vmul.f32 %v83, 0.003906211
    %v92 = vmul.f32 %v84, 0.003906211
    %v93 = vmul.f32 %v85, 0.003906211
    %v94 = vmul.f32 %v86, 0.003906211
    %v95 = vmul.f32 %v87, 0.003906211
    %v96 = vmul.f32 %v88, 0.003906211
    %v97 = vmul.f32 %v89, 0.003906211
    %v98 = vadd.f32 %v90, 5e-06
    %v99 = vadd.f32 %v91, 5e-06
    %v100 = vadd.f32 %v92, 5e-06
    %v101 = vadd.f32 %v93, 5e-06
    %v102 = vadd.f32 %v94, 5e-06
    %v103 = vadd.f32 %v95, 5e-06
    %v104 = vadd.f32 %v96, 5e-06
    %v105 = vadd.f32 %v97, 5e-06
    %v106 = vlog2.pop %v98
    %v107 = vmul.f32 %v106, 0.6931472
    %v108 = vlog2.pop %v99
    %v109 = vmul.f32 %v108, 0.6931472
    %v110 = vlog2.pop %v100
    %v111 = vmul.f32 %v110, 0.6931472
    %v112 = vlog2.pop %v101
    %v113 = vmul.f32 %v112, 0.6931472
    %v114 = vlog2.pop %v102
    %v115 = vmul.f32 %v114, 0.6931472
    %v116 = vlog2.pop %v103
    %v117 = vmul.f32 %v116, 0.6931472
    %v118 = vlog2.pop %v104
    %v119 = vmul.f32 %v118, 0.6931472
    %v120 = vlog2.pop %v105
    %v121 = vmul.f32 %v120, 0.6931472
    %v122 = vsub.f32 1.0, %v98
    %v123 = vsub.f32 1.0, %v99
    %v124 = vsub.f32 1.0, %v100
    %v125 = vsub.f32 1.0, %v101
    %v126 = vsub.f32 1.0, %v102
    %v127 = vsub.f32 1.0, %v103
    %v128 = vsub.f32 1.0, %v104
    %v129 = vsub.f32 1.0, %v105
    %v130 = vlog2.pop %v122
    %v131 = vmul.f32 %v130, 0.6931472
    %v132 = vlog2.pop %v123
    %v133 = vmul.f32 %v132, 0.6931472
    %v134 = vlog2.pop %v124
    %v135 = vmul.f32 %v134, 0.6931472
    %v136 = vlog2.pop %v125
    %v137 = vmul.f32 %v136, 0.6931472
    %v138 = vlog2.pop %v126
    %v139 = vmul.f32 %v138, 0.6931472
    %v140 = vlog2.pop %v127
    %v141 = vmul.f32 %v140, 0.6931472
    %v142 = vlog2.pop %v128
    %v143 = vmul.f32 %v142, 0.6931472
    %v144 = vlog2.pop %v129
    %v145 = vmul.f32 %v144, 0.6931472
    %v146 = vsub.f32 0.0, %v107
    %v147 = vsub.f32 0.0, %v109
    %v148 = vsub.f32 0.0, %v111
    %v149 = vsub.f32 0.0, %v113
    %v150 = vsub.f32 0.0, %v115
    %v151 = vsub.f32 0.0, %v117
    %v152 = vsub.f32 0.0, %v119
    %v153 = vsub.f32 0.0, %v121
    %v154 = vsub.f32 %v146, %v131
    %v155 = vsub.f32 %v147, %v133
    %v156 = vsub.f32 %v148, %v135
    %v157 = vsub.f32 %v149, %v137
    %v158 = vsub.f32 %v150, %v139
    %v159 = vsub.f32 %v151, %v141
    %v160 = vsub.f32 %v152, %v143
    %v161 = vsub.f32 %v153, %v145
    %v162 = vld [vmem:[%s1] sm:$0xff]
    %v163 = vadd.f32 %v162, -5678.272
    %v164 = vadd.f32 %v154, %v155
    %v165 = vadd.f32 %v164, %v156
    %v166 = vadd.f32 %v165, %v157
    %v167 = vadd.f32 %v166, %v158
    %v168 = vadd.f32 %v167, %v159
    %v169 = vadd.f32 %v168, %v160
    %v170 = vadd.f32 %v169, %v161
    %171 = vadd.xlane.f32.xlu0 %v170
    %v172 = vpop.xlane.xlu0 %171
    %v173 = vadd.f32 %v163, %v172
    %vm174 = vcmask 7168
    %175 = vst.msk [vmem:[%s3] sm:$0xff] %vm174, %v173
    %v176 = vsub.f32 %v107, %v131
    %v177 = vsub.f32 %v109, %v133
    %v178 = vsub.f32 %v111, %v135
    %v179 = vsub.f32 %v113, %v137
    %v180 = vsub.f32 %v115, %v139
    %v181 = vsub.f32 %v117, %v141
    %v182 = vsub.f32 %v119, %v143
    %v183 = vsub.f32 %v121, %v145
    %184 = vst [vmem:[#allocation5] sm:$0xff] %v176
    %185 = vst [vmem:[#allocation5 + $0x8] sm:$0xff] %v177
    %186 = vst [vmem:[#allocation5 + $0x10] sm:$0xff] %v178
    %187 = vst [vmem:[#allocation5 + $0x18] sm:$0xff] %v179
    %188 = vst [vmem:[#allocation5 + $0x20] sm:$0xff] %v180
    %189 = vst [vmem:[#allocation5 + $0x28] sm:$0xff] %v181
    %190 = vst [vmem:[#allocation5 + $0x30] sm:$0xff] %v182
    %191 = vst [vmem:[#allocation5 + $0x38] sm:$0xff] %v183
    // Predicated region
    $region14: #{tpu_custom_call.1} parent=1 // pred_check
      _
    $region15: #{tpu_custom_call.1} parent=1 // pred_check_branch
      %193 = sbr.rel (0) target = $region17
    $region16: #{tpu_custom_call.1} parent=1 // pred_region
      %s195 = ssub.s32 1024, 1024
      %196 = vsyncadd [#allocation4], %s195
      %s198 = sshll.u32 [#allocation5], 4
      %s199 = int_to_ptr.vmem [resolvable:$true] %s198
      %201 = dma.vmem_to_hbm [thread:$0]  %s199, 1024, %s2, [#allocation4]
    $region17: #{tpu_custom_call.1} parent=1 // pred_fallthru
      _
    // Predicated region
    $region18: #{tpu_custom_call.1} parent=1 // pred_check
      _
    $region19: #{tpu_custom_call.1} parent=1 // pred_check_branch
      %203 = sbr.rel (0) target = $region21
    $region20: #{tpu_custom_call.1} parent=1 // pred_region
      _
    $region21: #{tpu_custom_call.1} parent=1 // pred_fallthru
      _
    // Predicated region
    $region22: #{tpu_custom_call.1} parent=1 // pred_check
      _
    $region23: #{tpu_custom_call.1} parent=1 // pred_check_branch
      %205 = sbr.rel (0) target = $region25
    $region24: #{tpu_custom_call.1} parent=1 // pred_region
      %206 = dma.done [#allocation4], 1024
    $region25: #{tpu_custom_call.1} parent=1 // pred_fallthru
      _
    // Predicated region
    $region26: #{tpu_custom_call.1} parent=1 // pred_check
      _
    $region27: #{tpu_custom_call.1} parent=1 // pred_check_branch
      %208 = sbr.rel (0) target = $region29
    $region28: #{tpu_custom_call.1} parent=1 // pred_region
      _
    $region29: #{tpu_custom_call.1} parent=1 // pred_fallthru
      _
    %209 = vsyncpa [#allocation3], 1
    %210 = vsyncpa [#allocation4], 1

</llo_original>
